<compile_context>
chip_gen: v7x
topology: tpu7x:2x2x1
jax: 0.10.0
libtpu: 0.0.40
codegen_flags: <defaults>
</compile_context>

<pallas_src>
import jax
import jax.numpy as jnp
from jax.experimental import pallas as pl
from jax.experimental.pallas import tpu as pltpu


def _codebook_kernel(x_ref, embed_ref, e2_ref, quant_ref, ind_ref, dist_ref):
    # x_ref:     (TM, Dp)  tile of input rows (feature dim zero-padded)
    # embed_ref: (C,  Dp)  full codebook (resident every grid step)
    # e2_ref:    (1,  C)   precomputed ||embed||^2 (exact, from unpadded dims)
    x = x_ref[...]
    e = embed_ref[...]
    e2 = e2_ref[...]

    # squared distances: ||x||^2 + ||e||^2 - 2 x.e^T   (clamped at 0)
    x2 = jnp.sum(x * x, axis=-1, keepdims=True)                     # (TM, 1)
    xy = jax.lax.dot_general(                                        # (TM, C) on MXU
        x, e, dimension_numbers=(((1,), (1,)), ((), ())),
        preferred_element_type=jnp.float32)
    d2 = jnp.maximum(x2 + e2 - 2.0 * xy, 0.0)

    # nearest codebook entry: argmax of -d2 == argmax of -sqrt(d2) (monotone)
    ind = jnp.argmax(-d2, axis=-1).astype(jnp.int32)                 # (TM,)
    ind_ref[...] = ind[None, :]                                      # lane-dense (1, TM)

    # dist output matches the module: -cdist(x, embed)
    dist_ref[...] = -jnp.sqrt(d2)

    # gather embed[ind] as a one-hot matmul (exact for f32, MXU-friendly)
    tm_, c_ = d2.shape
    onehot = (jax.lax.broadcasted_iota(jnp.int32, (tm_, c_), 1)
              == ind[:, None]).astype(jnp.float32)                   # (TM, C)
    quant_ref[...] = jnp.dot(onehot, e, preferred_element_type=jnp.float32)


def euclidean_codebook_forward(x, embed, *, tm=256):
    """Pallas implementation of EuclideanCodebook.forward.

    Args:
      x:     f32[N, D]
      embed: f32[C, D]  (codebook)
    Returns:
      (quantize f32[N, D], embed_ind i32[N], dist f32[N, C])
    """
    assert x.ndim == 2 and x.dtype == jnp.float32
    N, D = x.shape
    C, D2 = embed.shape
    assert D == D2

    # Pad the feature dim to a multiple of 128 lanes (exact for squared dists).
    Dp = ((D + 127) // 128) * 128
    # Shrink the row tile for tiny inputs; keep it a multiple of 8 (f32 sublanes).
    tm = min(tm, max(8, ((N + 7) // 8) * 8))
    tm = ((tm + 7) // 8) * 8
    Np = ((N + tm - 1) // tm) * tm
    G = Np // tm

    xp = jnp.zeros((Np, Dp), jnp.float32).at[:N, :D].set(x)
    ep = jnp.zeros((C, Dp), jnp.float32).at[:, :D].set(embed)
    e2 = jnp.sum(embed.astype(jnp.float32) ** 2, axis=-1)[None, :]   # (1, C)

    # NOTE: for very large C / tm, set vmem_limit_bytes (per-chip budget:
    # ~128 MiB v5e/v6e, 64 MiB v7x) and/or tile the codebook axis; the demo
    # sizes fit comfortably in the default scoped VMEM.
    quant, ind2d, dist = pl.pallas_call(
        _codebook_kernel,
        out_shape=(
            jax.ShapeDtypeStruct((Np, Dp), jnp.float32),
            jax.ShapeDtypeStruct((G, tm), jnp.int32),
            jax.ShapeDtypeStruct((Np, C), jnp.float32),
        ),
        grid_spec=pltpu.PrefetchScalarGridSpec(
            num_scalar_prefetch=0,
            grid=(G,),
            in_specs=[
                pl.BlockSpec((tm, Dp), lambda i: (i, 0)),  # x tile
                pl.BlockSpec((C, Dp), lambda i: (0, 0)),   # full codebook (resident)
                pl.BlockSpec((1, C), lambda i: (0, 0)),    # ||e||^2 (resident)
            ],
            out_specs=[
                pl.BlockSpec((tm, Dp), lambda i: (i, 0)),  # quantize tile
                pl.BlockSpec((1, tm), lambda i: (i, 0)),   # indices (lane-dense row)
                pl.BlockSpec((tm, C), lambda i: (i, 0)),   # dist tile
            ],
        ),
        compiler_params=pltpu.CompilerParams(
            dimension_semantics=("parallel",)),
    )(xp, ep, e2)

    return quant[:N, :D], ind2d.reshape(Np)[:N], dist[:N, :]


def kaiming_uniform_init(key, codebook_size, dim):
    # nn.init.kaiming_uniform_ default: a=0, fan_in=dim, gain=sqrt(2)
    # bound = gain * sqrt(3 / fan_in) = sqrt(6 / dim)
    bound = jnp.sqrt(6.0 / dim)
    return jax.random.uniform(key, (codebook_size, dim),
                              dtype=jnp.float32, minval=-bound, maxval=bound)


if __name__ == "__main__":
    dim = 32
    codebook_size = 128
    n_tokens = 16

    key = jax.random.PRNGKey(0)
    k_embed, k_x = jax.random.split(key)

    # deterministic parameter init (module's `embed`); cluster_size / embed_avg
    # do not participate in forward.
    embed = kaiming_uniform_init(k_embed, codebook_size, dim)
    x = jax.random.normal(k_x, (n_tokens, dim), dtype=jnp.float32)

    quantize, embed_ind, dist = euclidean_codebook_forward(x, embed)
    jax.block_until_ready((quantize, embed_ind, dist))

    # plain-JAX reference check
    x2 = jnp.sum(x ** 2, axis=-1, keepdims=True)
    y2 = jnp.sum(embed ** 2, axis=-1).reshape(1, -1)
    xy = jnp.einsum('bd,cd->bc', x, embed) * -2.0
    dist_ref = -jnp.sqrt(jnp.maximum(x2 + y2 + xy, 0.0))
    ind_ref = jnp.argmax(dist_ref, axis=-1)
    quant_ref = embed[ind_ref]

    assert dist.shape == (n_tokens, codebook_size)
    assert embed_ind.shape == (n_tokens,)
    assert quantize.shape == (n_tokens, dim)
    assert jnp.allclose(dist, dist_ref, atol=1e-4), "dist mismatch"
    assert jnp.array_equal(embed_ind, ind_ref.astype(jnp.int32)), "index mismatch"
    assert jnp.allclose(quantize, quant_ref, atol=1e-5), "quantize mismatch"

    print("KERNEL_OK")
</pallas_src>

<mosaic_0001>
module attributes {stable_mosaic.version = 11 : i64} {
  func.func @_codebook_kernel(%arg0: i32, %arg1: memref<16x128xf32, #tpu.memory_space<vmem>>, %arg2: memref<128x128xf32, #tpu.memory_space<vmem>>, %arg3: memref<1x128xf32, #tpu.memory_space<vmem>>, %arg4: memref<16x128xf32, #tpu.memory_space<vmem>>, %arg5: memref<1x16xi32, #tpu.memory_space<vmem>>, %arg6: memref<16x128xf32, #tpu.memory_space<vmem>>) attributes {dimension_semantics = [#tpu.dimension_semantics<parallel>], iteration_bounds = array<i64: 1>, scalar_prefetch = 0 : i64, scratch_operands = 0 : i64, tpu.core_type = #tpu.core_type<tc>, window_params = [{transform_indices = @transform_0, window_bounds = array<i64: 16, 128>}, {pipeline_mode = #tpu.pipeline_mode<synchronous>, transform_indices = @transform_1, window_bounds = array<i64: 128, 128>}, {pipeline_mode = #tpu.pipeline_mode<synchronous>, transform_indices = @transform_2, window_bounds = array<i64: 1, 128>}, {transform_indices = @transform_3, window_bounds = array<i64: 16, 128>}, {transform_indices = @transform_4, window_bounds = array<i64: 1, 16>}, {transform_indices = @transform_5, window_bounds = array<i64: 16, 128>}]} {
    %c0 = arith.constant 0 : index
    %c0_0 = arith.constant 0 : index
    %0 = vector.load %arg1[%c0, %c0_0] : memref<16x128xf32, #tpu.memory_space<vmem>>, vector<16x128xf32>
    %c0_1 = arith.constant 0 : index
    %c0_2 = arith.constant 0 : index
    %1 = vector.load %arg2[%c0_1, %c0_2] : memref<128x128xf32, #tpu.memory_space<vmem>>, vector<128x128xf32>
    %c0_3 = arith.constant 0 : index
    %c0_4 = arith.constant 0 : index
    %2 = vector.load %arg3[%c0_3, %c0_4] : memref<1x128xf32, #tpu.memory_space<vmem>>, vector<1x128xf32>
    %3 = arith.mulf %0, %0 : vector<16x128xf32>
    %cst = arith.constant dense<0.000000e+00> : vector<16xf32>
    %4 = vector.multi_reduction <add>, %3, %cst [1] : vector<16x128xf32> to vector<16xf32>
    %5 = vector.shape_cast %4 : vector<16xf32> to vector<16x1xf32>
    %cst_5 = arith.constant dense<0.000000e+00> : vector<16x128xf32>
    %6 = tpu.matmul %0, %1, %cst_5 {dimension_numbers = #tpu.dot_dimension_numbers<[1], [1], [0], [0], [0, 0, 1, 0], [], []>} : vector<16x128xf32>, vector<128x128xf32>, vector<16x128xf32> -> vector<16x128xf32>
    %7 = vector.broadcast %5 : vector<16x1xf32> to vector<16x128xf32>
    %8 = vector.broadcast %2 : vector<1x128xf32> to vector<16x128xf32>
    %9 = arith.addf %7, %8 : vector<16x128xf32>
    %cst_6 = arith.constant 2.000000e+00 : f32
    %10 = vector.broadcast %cst_6 : f32 to vector<16x128xf32>
    %11 = arith.mulf %10, %6 : vector<16x128xf32>
    %12 = arith.subf %9, %11 : vector<16x128xf32>
    %cst_7 = arith.constant 0.000000e+00 : f32
    %13 = vector.broadcast %cst_7 : f32 to vector<16x128xf32>
    %14 = arith.maximumf %12, %13 : vector<16x128xf32>
    %cst_8 = arith.constant 0.000000e+00 : f32
    %15 = vector.broadcast %cst_8 : f32 to vector<16x128xf32>
    %16 = arith.subf %15, %14 : vector<16x128xf32>
    %17 = tpu.reduce_index %16 {axis = 1 : i32, kind = #tpu.reduction_kind<arg_max>} : vector<16x128xf32> -> vector<16xi32>
    %18 = vector.shape_cast %17 : vector<16xi32> to vector<1x16xi32>
    %c0_9 = arith.constant 0 : index
    %c0_10 = arith.constant 0 : index
    %19 = vector.load %arg5[%c0_9, %c0_10] : memref<1x16xi32, #tpu.memory_space<vmem>>, vector<1x16xi32>
    tpu.vector_store %arg5[%c0_9, %c0_10], %18 {strides = array<i32>} : memref<1x16xi32, #tpu.memory_space<vmem>>, vector<1x16xi32>,
    %20 = math.sqrt %14 : vector<16x128xf32>
    %cst_11 = arith.constant 0.000000e+00 : f32
    %21 = vector.broadcast %cst_11 : f32 to vector<16x128xf32>
    %22 = arith.subf %21, %20 : vector<16x128xf32>
    %c0_12 = arith.constant 0 : index
    %c0_13 = arith.constant 0 : index
    %23 = vector.load %arg6[%c0_12, %c0_13] : memref<16x128xf32, #tpu.memory_space<vmem>>, vector<16x128xf32>
    tpu.vector_store %arg6[%c0_12, %c0_13], %22 {strides = array<i32>} : memref<16x128xf32, #tpu.memory_space<vmem>>, vector<16x128xf32>,
    %24 = tpu.iota {dimensions = array<i32: 1>} : vector<16x128xi32>
    %25 = vector.shape_cast %17 : vector<16xi32> to vector<16x1xi32>
    %26 = vector.broadcast %25 : vector<16x1xi32> to vector<16x128xi32>
    %27 = arith.cmpi eq, %24, %26 : vector<16x128xi32>
    %28 = arith.extui %27 : vector<16x128xi1> to vector<16x128xi32>
    %29 = arith.sitofp %28 : vector<16x128xi32> to vector<16x128xf32>
    %cst_14 = arith.constant dense<0.000000e+00> : vector<16x128xf32>
    %30 = tpu.matmul %29, %1, %cst_14 {dimension_numbers = #tpu.dot_dimension_numbers<[1], [0], [0], [1], [0, 0, 1, 1], [], []>} : vector<16x128xf32>, vector<128x128xf32>, vector<16x128xf32> -> vector<16x128xf32>
    %c0_15 = arith.constant 0 : index
    %c0_16 = arith.constant 0 : index
    %31 = vector.load %arg4[%c0_15, %c0_16] : memref<16x128xf32, #tpu.memory_space<vmem>>, vector<16x128xf32>
    tpu.vector_store %arg4[%c0_15, %c0_16], %30 {strides = array<i32>} : memref<16x128xf32, #tpu.memory_space<vmem>>, vector<16x128xf32>,
    return
  }
  func.func @transform_0(%arg0: i32) -> (i32, i32) {
    %c0_i32 = arith.constant 0 : i32
    %c0_i32_0 = arith.constant 0 : i32
    return %arg0, %c0_i32 : i32, i32
  }
  func.func @transform_1(%arg0: i32) -> (i32, i32) {
    %c0_i32 = arith.constant 0 : i32
    %c0_i32_0 = arith.constant 0 : i32
    %c0_i32_1 = arith.constant 0 : i32
    return %c0_i32, %c0_i32_0 : i32, i32
  }
  func.func @transform_2(%arg0: i32) -> (i32, i32) {
    %c0_i32 = arith.constant 0 : i32
    %c0_i32_0 = arith.constant 0 : i32
    %c0_i32_1 = arith.constant 0 : i32
    return %c0_i32, %c0_i32_0 : i32, i32
  }
  func.func @transform_3(%arg0: i32) -> (i32, i32) {
    %c0_i32 = arith.constant 0 : i32
    %c0_i32_0 = arith.constant 0 : i32
    return %arg0, %c0_i32 : i32, i32
  }
  func.func @transform_4(%arg0: i32) -> (i32, i32) {
    %c0_i32 = arith.constant 0 : i32
    %c0_i32_0 = arith.constant 0 : i32
    return %arg0, %c0_i32 : i32, i32
  }
  func.func @transform_5(%arg0: i32) -> (i32, i32) {
    %c0_i32 = arith.constant 0 : i32
    %c0_i32_0 = arith.constant 0 : i32
    return %arg0, %c0_i32 : i32, i32
  }
}

</mosaic_0001>

<llo_original>
// kernel: tpu_custom_call.1
$region0: #{tpu_custom_call.1}
  #allocation0 [shape = 'u32[]', space=smem, size = 0x4, offset = 0x4, fixed_abs, tag = 'smem constant byte address 0x4 - core index']
  #allocation1 [shape = 'u32[144,128]{1,0:T(1,128)}', space=vmem, size = 0x12000, scoped, tag = 'internal scratch']
  %s0 = inlined_call_operand.hbm [shape: f32[16,128], index: 0, kind: input, shape index: {}]
  %s1 = inlined_call_operand.hbm [shape: f32[128,128], index: 1, kind: input, shape index: {}]
  %s2 = inlined_call_operand.vmem [shape: f32[1,128], index: 2, kind: input, shape index: {}]
  %s3 = inlined_call_operand.hbm [shape: f32[16,128], index: 3, kind: output, shape index: {0}]
  %s4 = inlined_call_operand.hbm [shape: s32[1,16], index: 4, kind: output, shape index: {1}]
  %s5 = inlined_call_operand.hbm [shape: f32[16,128], index: 5, kind: output, shape index: {2}]
  %6 = xla_tuple %s3, %s4, %s5
  %s7 = sld [smem:[#allocation0]]
  $region46: #{tpu_custom_call.1} parent=0
    _
  %s9 = ssub.s32 1, %s7
  %s10 = scalar_select 0, %s9, %s7
  $region1: #{tpu_custom_call.1} parent=0
    #allocation2 [shape = 'u8[8192]{0}', space=vmem, size = 0x2000, scoped, tag = 'input window, operand 0, single buffered']
    #allocation3 [shape = 's32[1]{0}', space=sflag, size = 0x4, scoped, tag = 'scoped memory for tpu_custom_call.1']
    #allocation4 [shape = 's32[1]{0}', space=sflag, size = 0x4, scoped, tag = 'scoped memory for tpu_custom_call.1']
    #allocation5 [shape = 'u8[65536]{0}', space=vmem, size = 0x10000, scoped, tag = 'input window, operand 1, single buffered']
    #allocation6 [shape = 's32[1]{0}', space=sflag, size = 0x4, scoped, tag = 'scoped memory for tpu_custom_call.1']
    #allocation7 [shape = 'u8[8192]{0}', space=vmem, size = 0x2000, scoped, tag = 'output window, operand 0, single buffered']
    #allocation8 [shape = 'u8[512]{0}', space=vmem, size = 0x400, scoped, tag = 'output window, operand 1, single buffered']
    #allocation9 [shape = 's32[1]{0}', space=sflag, size = 0x4, scoped, tag = 'scoped memory for tpu_custom_call.1']
    #allocation10 [shape = 'u8[8192]{0}', space=vmem, size = 0x2000, scoped, tag = 'output window, operand 2, single buffered']
    %11 = vsyncpa [#allocation3], 0
    %12 = vsyncpa [#allocation6], 0
    %13 = vsyncpa [#allocation4], 0
    %14 = vsyncpa [#allocation9], 0
    // Predicated region
    $region2: #{tpu_custom_call.1} parent=1 // pred_check
      _
    $region3: #{tpu_custom_call.1} parent=1 // pred_check_branch
      %16 = sbr.rel (0) target = $region5
    $region4: #{tpu_custom_call.1} parent=1 // pred_region
      %s18 = ssub.s32 256, 256
      %19 = vsyncadd [#allocation3], %s18
      %s20 = sshll.u32 [#allocation2], 4
      %s21 = int_to_ptr.vmem [resolvable:$true] %s20
      %26 = dma.hbm_to_vmem [thread:$0]  %s0, 256, %s21, [#allocation3], 128, 128, 8
    $region5: #{tpu_custom_call.1} parent=1 // pred_fallthru
      _
    // Predicated region
    $region6: #{tpu_custom_call.1} parent=1 // pred_check
      _
    $region7: #{tpu_custom_call.1} parent=1 // pred_check_branch
      %28 = sbr.rel (0) target = $region9
    $region8: #{tpu_custom_call.1} parent=1 // pred_region
      %s30 = ssub.s32 2048, 2048
      %31 = vsyncadd [#allocation6], %s30
      %s32 = sshll.u32 [#allocation5], 4
      %s33 = int_to_ptr.vmem [resolvable:$true] %s32
      %38 = dma.hbm_to_vmem [thread:$0]  %s1, 2048, %s33, [#allocation6], 128, 128, 8
    $region9: #{tpu_custom_call.1} parent=1 // pred_fallthru
      _
    // Predicated region
    $region10: #{tpu_custom_call.1} parent=1 // pred_check
      _
    $region11: #{tpu_custom_call.1} parent=1 // pred_check_branch
      %40 = sbr.rel (0) target = $region13
    $region12: #{tpu_custom_call.1} parent=1 // pred_region
      _
    $region13: #{tpu_custom_call.1} parent=1 // pred_fallthru
      _
    // Predicated region
    $region14: #{tpu_custom_call.1} parent=1 // pred_check
      _
    $region15: #{tpu_custom_call.1} parent=1 // pred_check_branch
      %42 = sbr.rel (0) target = $region17
    $region16: #{tpu_custom_call.1} parent=1 // pred_region
      %43 = dma.done [#allocation3], 256
    $region17: #{tpu_custom_call.1} parent=1 // pred_fallthru
      _
    // Predicated region
    $region18: #{tpu_custom_call.1} parent=1 // pred_check
      _
    $region19: #{tpu_custom_call.1} parent=1 // pred_check_branch
      %45 = sbr.rel (0) target = $region21
    $region20: #{tpu_custom_call.1} parent=1 // pred_region
      %46 = dma.done [#allocation6], 2048
    $region21: #{tpu_custom_call.1} parent=1 // pred_fallthru
      _
    %v47 = vld [vmem:[#allocation2] sm:$0xff]
    %v48 = vld [vmem:[#allocation2 + $0x8] sm:$0xff]
    %v49 = vld [vmem:[#allocation5] sm:$0xff]
    %v50 = vld [vmem:[#allocation5 + $0x8] sm:$0xff]
    %v51 = vld [vmem:[#allocation5 + $0x10] sm:$0xff]
    %v52 = vld [vmem:[#allocation5 + $0x18] sm:$0xff]
    %v53 = vld [vmem:[#allocation5 + $0x20] sm:$0xff]
    %v54 = vld [vmem:[#allocation5 + $0x28] sm:$0xff]
    %v55 = vld [vmem:[#allocation5 + $0x30] sm:$0xff]
    %v56 = vld [vmem:[#allocation5 + $0x38] sm:$0xff]
    %v57 = vld [vmem:[#allocation5 + $0x40] sm:$0xff]
    %v58 = vld [vmem:[#allocation5 + $0x48] sm:$0xff]
    %v59 = vld [vmem:[#allocation5 + $0x50] sm:$0xff]
    %v60 = vld [vmem:[#allocation5 + $0x58] sm:$0xff]
    %v61 = vld [vmem:[#allocation5 + $0x60] sm:$0xff]
    %v62 = vld [vmem:[#allocation5 + $0x68] sm:$0xff]
    %v63 = vld [vmem:[#allocation5 + $0x70] sm:$0xff]
    %v64 = vld [vmem:[#allocation5 + $0x78] sm:$0xff]
    %v65 = vld [vmem:[%s2] sm:$0x1]
    %v66 = vmul.f32 %v47, %v47
    %v67 = vmul.f32 %v48, %v48
    %68 = vadd.xlane.f32.xlu0 %v66
    %v69 = vpop.xlane.xlu0 %68
    %70 = vadd.xlane.f32.xlu0 %v67
    %v71 = vpop.xlane.xlu0 %70
    %72 = vmatprep.subr.mxu0 0.0
    %73 = vmatpush1.xpose.msra.mxu0 %v49
    %74 = vmatprep.subr.mxu0 0.0
    %75 = vmatpush1.xpose.msra.mxu0 %v50
    %76 = vmatprep.subr.mxu0 0.0
    %77 = vmatpush1.xpose.msra.mxu0 %v51
    %78 = vmatprep.subr.mxu0 0.0
    %79 = vmatpush1.xpose.msra.mxu0 %v52
    %80 = vmatprep.subr.mxu0 0.0
    %81 = vmatpush1.xpose.msra.mxu0 %v53
    %82 = vmatprep.subr.mxu0 0.0
    %83 = vmatpush1.xpose.msra.mxu0 %v54
    %84 = vmatprep.subr.mxu0 0.0
    %85 = vmatpush1.xpose.msra.mxu0 %v55
    %86 = vmatprep.subr.mxu0 0.0
    %87 = vmatpush1.xpose.msra.mxu0 %v56
    %88 = vmatprep.subr.mxu0 0.0
    %89 = vmatpush1.xpose.msra.mxu0 %v57
    %90 = vmatprep.subr.mxu0 0.0
    %91 = vmatpush1.xpose.msra.mxu0 %v58
    %92 = vmatprep.subr.mxu0 0.0
    %93 = vmatpush1.xpose.msra.mxu0 %v59
    %94 = vmatprep.subr.mxu0 0.0
    %95 = vmatpush1.xpose.msra.mxu0 %v60
    %96 = vmatprep.subr.mxu0 0.0
    %97 = vmatpush1.xpose.msra.mxu0 %v61
    %98 = vmatprep.subr.mxu0 0.0
    %99 = vmatpush1.xpose.msra.mxu0 %v62
    %100 = vmatprep.subr.mxu0 0.0
    %101 = vmatpush1.xpose.msra.mxu0 %v63
    %102 = vmatprep.subr.mxu0 0.0
    %103 = vmatpush1.xpose.msra.mxu0 %v64
    %104 = vmatprep.subr.mxu0 0.0
    %105 = vmatpush1.xpose.msra.mxu0 0.0
    %106 = vmatprep.subr.mxu0 0.0
    %107 = vmatpush1.xpose.msra.mxu0 0.0
    %108 = vmatprep.subr.mxu0 0.0
    %109 = vmatpush1.xpose.msra.mxu0 0.0
    %110 = vmatprep.subr.mxu0 0.0
    %111 = vmatpush1.xpose.msra.mxu0 0.0
    %112 = vmatprep.subr.mxu0 0.0
    %113 = vmatpush1.xpose.msra.mxu0 0.0
    %114 = vmatprep.subr.mxu0 0.0
    %115 = vmatpush1.xpose.msra.mxu0 0.0
    %116 = vmatprep.subr.mxu0 0.0
    %117 = vmatpush1.xpose.msra.mxu0 0.0
    %118 = vmatprep.subr.mxu0 0.0
    %119 = vmatpush1.xpose.msra.mxu0 0.0
    %120 = vmatprep.subr.mxu0 0.0
    %121 = vmatpush1.xpose.msra.mxu0 0.0
    %122 = vmatprep.subr.mxu0 0.0
    %123 = vmatpush1.xpose.msra.mxu0 0.0
    %124 = vmatprep.subr.mxu0 0.0
    %125 = vmatpush1.xpose.msra.mxu0 0.0
    %126 = vmatprep.subr.mxu0 0.0
    %127 = vmatpush1.xpose.msra.mxu0 0.0
    %128 = vmatprep.subr.mxu0 0.0
    %129 = vmatpush1.xpose.msra.mxu0 0.0
    %130 = vmatprep.subr.mxu0 0.0
    %131 = vmatpush1.xpose.msra.mxu0 0.0
    %132 = vmatprep.subr.mxu0 0.0
    %133 = vmatpush1.xpose.msra.mxu0 0.0
    %134 = vmatprep.subr.mxu0 0.0
    %135 = vmatpush1.xpose.msra.mxu0 0.0
    %136 = vmatprep.mubr.f32.mxu0 0.0
    %137 = vmatmul.mubr.f32.gmra.mrb[0].mxu0 %v47
    %v138 = vpop.f32.mrb[0].mxu0
    %v139 = vadd.f32 0.0, %v138
    %v140 = vpop.f32.mrb[0].mxu0
    %141 = vmatprep.mubr.f32.mxu0 0.0
    %142 = vmatmul.mubr.f32.gmra.mrb[0].mxu0 %v48
    %v143 = vpop.f32.mrb[0].mxu0
    %v144 = vadd.f32 0.0, %v143
    %v145 = vpop.f32.mrb[0].mxu0
    %146 = vdwg.mxu0
    %v148 = vlaneseq
    %v149 = vshrl.u32 %v148, 7
    %v150 = vsub.s32 0, %v149
    %v151 = vrot.slane %v65, %v150
    %v153 = vadd.f32 %v69, %v151
    %v154 = vadd.f32 %v71, %v151
    %v155 = vmul.f32 %v139, 2.0
    %v156 = vmul.f32 %v144, 2.0
    %v157 = vsub.f32 %v153, %v155
    %v158 = vsub.f32 %v154, %v156
    %v159 = vmax.f32 %v157, 0.0
    %v160 = vmax.f32 %v158, 0.0
    %v161 = vsub.f32 0.0, %v159
    %v162 = vsub.f32 0.0, %v160
    %163 = vmax.index.xlane.f32.xlu0 %v161
    %v164 = vpop.xlane.xlu0 %163
    %165 = vmax.index.xlane.f32.xlu0 %v162
    %v166 = vpop.xlane.xlu0 %165
    %v167 = vlaneseq
    %v168 = vand.u32 %v167, 127
    %v169 = vlaneseq
    %v170 = vshrl.u32 %v169, 7
    %v171 = vsub.s32 %v168, %v170
    %v172 = vrot.slane %v164, %v171
    %v173 = vadd.s32 %v168, 4294967288
    %v174 = vlaneseq
    %v175 = vshrl.u32 %v174, 7
    %v176 = vsub.s32 %v173, %v175
    %v177 = vrot.slane %v166, %v176
    %vm178 = vcmask 130112
    %v179 = vsel %vm178, %v177, %v172
    %vm180 = vcmask 122880
    %181 = vst.msk [vmem:[#allocation8] sm:$0x1] %vm180, %v179
    %v182 = vrsqrt.pop %v159
    %v183 = vmul.f32 %v159, %v182
    %vm184 = vcmp.eq.f32.partialorder %v159, inf
    %v185 = vsel %vm184, %v159, %v183
    %vm186 = vcmp.eq.f32.partialorder %v159, 0.0
    %v187 = vand.u32 %v159, 2147483648
    %v188 = vsel %vm186, %v187, %v185
    %v189 = vrsqrt.pop %v160
    %v190 = vmul.f32 %v160, %v189
    %vm191 = vcmp.eq.f32.partialorder %v160, inf
    %v192 = vsel %vm191, %v160, %v190
    %vm193 = vcmp.eq.f32.partialorder %v160, 0.0
    %v194 = vand.u32 %v160, 2147483648
    %v195 = vsel %vm193, %v194, %v192
    %v196 = vsub.f32 0.0, %v188
    %v197 = vsub.f32 0.0, %v195
    %198 = vst [vmem:[#allocation10] sm:$0xff] %v196
    %199 = vst [vmem:[#allocation10 + $0x8] sm:$0xff] %v197
    %vm200 = vcmp.eq.s32.totalorder %v168, %v164
    %vm201 = vcmp.eq.s32.totalorder %v168, %v166
    %v202 = vsel %vm200, 1, 0
    %v203 = vsel %vm201, 1, 0
    %v204 = vcvt.s32.f32 %v202
    %v205 = vcvt.s32.f32 %v203
    %206 = vmatprep.subr.mxu0 0.0
    %207 = vmatpush1.msra.mxu0 %v49
    %208 = vmatprep.subr.mxu0 0.0
    %209 = vmatpush1.msra.mxu0 %v50
    %210 = vmatprep.subr.mxu0 0.0
    %211 = vmatpush1.msra.mxu0 %v51
    %212 = vmatprep.subr.mxu0 0.0
    %213 = vmatpush1.msra.mxu0 %v52
    %214 = vmatprep.subr.mxu0 0.0
    %215 = vmatpush1.msra.mxu0 %v53
    %216 = vmatprep.subr.mxu0 0.0
    %217 = vmatpush1.msra.mxu0 %v54
    %218 = vmatprep.subr.mxu0 0.0
    %219 = vmatpush1.msra.mxu0 %v55
    %220 = vmatprep.subr.mxu0 0.0
    %221 = vmatpush1.msra.mxu0 %v56
    %222 = vmatprep.subr.mxu0 0.0
    %223 = vmatpush1.msra.mxu0 %v57
    %224 = vmatprep.subr.mxu0 0.0
    %225 = vmatpush1.msra.mxu0 %v58
    %226 = vmatprep.subr.mxu0 0.0
    %227 = vmatpush1.msra.mxu0 %v59
    %228 = vmatprep.subr.mxu0 0.0
    %229 = vmatpush1.msra.mxu0 %v60
    %230 = vmatprep.subr.mxu0 0.0
    %231 = vmatpush1.msra.mxu0 %v61
    %232 = vmatprep.subr.mxu0 0.0
    %233 = vmatpush1.msra.mxu0 %v62
    %234 = vmatprep.subr.mxu0 0.0
    %235 = vmatpush1.msra.mxu0 %v63
    %236 = vmatprep.subr.mxu0 0.0
    %237 = vmatpush1.msra.mxu0 %v64
    %238 = vmatprep.subr.mxu0 0.0
    %239 = vmatpush1.msra.mxu0 0.0
    %240 = vmatprep.subr.mxu0 0.0
    %241 = vmatpush1.msra.mxu0 0.0
    %242 = vmatprep.subr.mxu0 0.0
    %243 = vmatpush1.msra.mxu0 0.0
    %244 = vmatprep.subr.mxu0 0.0
    %245 = vmatpush1.msra.mxu0 0.0
    %246 = vmatprep.subr.mxu0 0.0
    %247 = vmatpush1.msra.mxu0 0.0
    %248 = vmatprep.subr.mxu0 0.0
    %249 = vmatpush1.msra.mxu0 0.0
    %250 = vmatprep.subr.mxu0 0.0
    %251 = vmatpush1.msra.mxu0 0.0
    %252 = vmatprep.subr.mxu0 0.0
    %253 = vmatpush1.msra.mxu0 0.0
    %254 = vmatprep.subr.mxu0 0.0
    %255 = vmatpush1.msra.mxu0 0.0
    %256 = vmatprep.subr.mxu0 0.0
    %257 = vmatpush1.msra.mxu0 0.0
    %258 = vmatprep.subr.mxu0 0.0
    %259 = vmatpush1.msra.mxu0 0.0
    %260 = vmatprep.subr.mxu0 0.0
    %261 = vmatpush1.msra.mxu0 0.0
    %262 = vmatprep.subr.mxu0 0.0
    %263 = vmatpush1.msra.mxu0 0.0
    %264 = vmatprep.subr.mxu0 0.0
    %265 = vmatpush1.msra.mxu0 0.0
    %266 = vmatprep.subr.mxu0 0.0
    %267 = vmatpush1.msra.mxu0 0.0
    %268 = vmatprep.subr.mxu0 0.0
    %269 = vmatpush1.msra.mxu0 0.0
    %270 = vmatprep.mubr.f32.mxu0 0.0
    %271 = vmatmul.mubr.f32.gmra.mrb[0].mxu0 %v204
    %v272 = vpop.f32.mrb[0].mxu0
    %v273 = vadd.f32 0.0, %v272
    %v274 = vpop.f32.mrb[0].mxu0
    %275 = vmatprep.mubr.f32.mxu0 0.0
    %276 = vmatmul.mubr.f32.gmra.mrb[0].mxu0 %v205
    %v277 = vpop.f32.mrb[0].mxu0
    %v278 = vadd.f32 0.0, %v277
    %v279 = vpop.f32.mrb[0].mxu0
    %280 = vdwg.mxu0
    %281 = vst [vmem:[#allocation7] sm:$0xff] %v273
    %282 = vst [vmem:[#allocation7 + $0x8] sm:$0xff] %v278
    // Predicated region
    $region22: #{tpu_custom_call.1} parent=1 // pred_check
      _
    $region23: #{tpu_custom_call.1} parent=1 // pred_check_branch
      %284 = sbr.rel (0) target = $region25
    $region24: #{tpu_custom_call.1} parent=1 // pred_region
      %s286 = ssub.s32 256, 256
      %287 = vsyncadd [#allocation4], %s286
      %s288 = sshll.u32 [#allocation7], 4
      %s289 = int_to_ptr.vmem [resolvable:$true] %s288
      %294 = dma.vmem_to_hbm [thread:$0]  %s289, 256, %s3, [#allocation4], 128, 128, 8
    $region25: #{tpu_custom_call.1} parent=1 // pred_fallthru
      _
    // Predicated region
    $region26: #{tpu_custom_call.1} parent=1 // pred_check
      _
    $region27: #{tpu_custom_call.1} parent=1 // pred_check_branch
      %296 = sbr.rel (0) target = $region29
    $region28: #{tpu_custom_call.1} parent=1 // pred_region
      %s298 = ssub.s32 16, 16
      %299 = vsyncadd [#allocation9], %s298
      %s301 = sshll.u32 [#allocation8], 4
      %s302 = int_to_ptr.vmem [resolvable:$true] %s301
      %304 = dma.vmem_to_hbm [thread:$0]  %s302, 16, %s4, [#allocation9]
    $region29: #{tpu_custom_call.1} parent=1 // pred_fallthru
      _
    // Predicated region
    $region30: #{tpu_custom_call.1} parent=1 // pred_check
      _
    $region31: #{tpu_custom_call.1} parent=1 // pred_check_branch
      %306 = sbr.rel (0) target = $region33
    $region32: #{tpu_custom_call.1} parent=1 // pred_region
      %s308 = ssub.s32 256, 256
      %309 = vsyncadd [#allocation9], %s308
      %s310 = sshll.u32 [#allocation10], 4
      %s311 = int_to_ptr.vmem [resolvable:$true] %s310
      %316 = dma.vmem_to_hbm [thread:$0]  %s311, 256, %s5, [#allocation9], 128, 128, 8
    $region33: #{tpu_custom_call.1} parent=1 // pred_fallthru
      _
    // Predicated region
    $region34: #{tpu_custom_call.1} parent=1 // pred_check
      _
    $region35: #{tpu_custom_call.1} parent=1 // pred_check_branch
      %318 = sbr.rel (0) target = $region37
    $region36: #{tpu_custom_call.1} parent=1 // pred_region
      %319 = dma.done [#allocation4], 256
    $region37: #{tpu_custom_call.1} parent=1 // pred_fallthru
      _
    // Predicated region
    $region38: #{tpu_custom_call.1} parent=1 // pred_check
      _
    $region39: #{tpu_custom_call.1} parent=1 // pred_check_branch
      %321 = sbr.rel (0) target = $region41
    $region40: #{tpu_custom_call.1} parent=1 // pred_region
      %322 = dma.done [#allocation9], 16
    $region41: #{tpu_custom_call.1} parent=1 // pred_fallthru
      _
    // Predicated region
    $region42: #{tpu_custom_call.1} parent=1 // pred_check
      _
    $region43: #{tpu_custom_call.1} parent=1 // pred_check_branch
      %324 = sbr.rel (0) target = $region45
    $region44: #{tpu_custom_call.1} parent=1 // pred_region
      %325 = dma.done [#allocation9], 256
    $region45: #{tpu_custom_call.1} parent=1 // pred_fallthru
      _
    %326 = vsyncpa [#allocation3], 1
    %327 = vsyncpa [#allocation6], 1
    %328 = vsyncpa [#allocation4], 1
    %329 = vsyncpa [#allocation9], 1

</llo_original>
